<compile_context>
chip_gen: v5e
topology: v5e:2x2
jax: 0.10.0
libtpu: 0.0.40
codegen_flags: <defaults>
</compile_context>

<pallas_src>
import math

import jax
import jax.numpy as jnp
from jax import lax
from jax.experimental import pallas as pl
from jax.experimental.pallas import tpu as pltpu


def _round_up(x, m):
    return ((x + m - 1) // m) * m


def _fused_rnn_kernel(x_ref, h0_ref, wx_ref, wh_ref, b_ref, hseq_ref, h_scratch):
    """One grid step == one block of T_BLK time steps of the recurrence.

    x_ref    : (T_BLK, B_pad, I_pad)   this block's inputs
    h0_ref   : (B_pad, H_pad)          initial hidden state (read at block 0)
    wx_ref   : (I_pad, H_pad)          input->hidden weights (VMEM-resident)
    wh_ref   : (H_pad, H_pad)          hidden->hidden weights (VMEM-resident)
    b_ref    : (B_pad, H_pad)          bias, pre-broadcast over batch rows
    hseq_ref : (T_BLK, B_pad, H_pad)   this block's output hidden states
    h_scratch: (B_pad, H_pad) VMEM     hidden state carried across grid steps
    """
    tb = pl.program_id(0)

    @pl.when(tb == 0)
    def _():
        h_scratch[...] = h0_ref[...]

    t_blk, b_pad, i_pad = x_ref.shape
    h_pad = wh_ref.shape[1]

    # Hoisted input projection for the whole time block: one big MXU pass.
    x_flat = x_ref[...].reshape(t_blk * b_pad, i_pad)
    xw = jnp.dot(x_flat, wx_ref[...], preferred_element_type=jnp.float32)
    xw = xw.reshape(t_blk, b_pad, h_pad) + b_ref[...]
    hseq_ref[...] = xw  # stage xw[t] in the output block (plain VMEM until writeback)

    # Sequential recurrence within the block: only h @ Wh per step.
    def step(t, h):
        z = hseq_ref[t] + jnp.dot(h, wh_ref[...], preferred_element_type=jnp.float32)
        h_new = jnp.tanh(z)
        hseq_ref[t] = h_new
        return h_new

    h_final = lax.fori_loop(0, t_blk, step, h_scratch[...], unroll=True)
    h_scratch[...] = h_final


def make_fused_rnn_call(seq_pad, t_blk, b_pad, i_pad, h_pad):
    """Builds a pallas_call running the full padded recurrence in one launch."""
    assert seq_pad % t_blk == 0
    return pl.pallas_call(
        _fused_rnn_kernel,
        out_shape=jax.ShapeDtypeStruct((seq_pad, b_pad, h_pad), jnp.float32),
        grid=(seq_pad // t_blk,),
        in_specs=[
            # x: one block of T_BLK time steps per grid iteration (double-buffered)
            pl.BlockSpec((t_blk, b_pad, i_pad), lambda tb: (tb, 0, 0)),
            # h0: same block every step -> DMA'd once
            pl.BlockSpec((b_pad, h_pad), lambda tb: (0, 0)),
            # Wx, Wh, bias: VMEM-resident across all steps
            pl.BlockSpec((i_pad, h_pad), lambda tb: (0, 0)),
            pl.BlockSpec((h_pad, h_pad), lambda tb: (0, 0)),
            pl.BlockSpec((b_pad, h_pad), lambda tb: (0, 0)),
        ],
        out_specs=pl.BlockSpec((t_blk, b_pad, h_pad), lambda tb: (tb, 0, 0)),
        scratch_shapes=[pltpu.VMEM((b_pad, h_pad), jnp.float32)],
        compiler_params=pltpu.CompilerParams(
            # Time blocks are strictly sequential (state carry): must stay
            # "arbitrary".  Only an added independent batch axis may ever be
            # marked "parallel".
            dimension_semantics=("arbitrary",)
        ),
    )


class RecurrentCell:
    """JAX/Pallas mirror of the PyTorch RecurrentCell (stateful, batch=1 hidden)."""

    def __init__(self, input_size, hidden_size, key, t_blk=8):
        self.input_size = input_size
        self.hidden_size = hidden_size
        self.t_blk = t_blk

        # nn.Linear default init: U(-1/sqrt(fan_in), 1/sqrt(fan_in)), fan_in = in+hid
        fan_in = input_size + hidden_size
        bound = 1.0 / math.sqrt(fan_in)
        kw, kb = jax.random.split(key)
        w = jax.random.uniform(kw, (hidden_size, fan_in), jnp.float32, -bound, bound)
        self.wx = jnp.transpose(w[:, :input_size])   # [input_size, hidden_size]
        self.wh = jnp.transpose(w[:, input_size:])   # [hidden_size, hidden_size]
        self.b = jax.random.uniform(kb, (hidden_size,), jnp.float32, -bound, bound)

        # stateful hidden, as in the PyTorch module
        self.h = jnp.zeros((1, hidden_size), jnp.float32)

        # (8,128)-aligned padded sizes for full-width vregs / unmasked stores
        self.b_pad = 8                                   # f32 sublane count
        self.i_pad = max(_round_up(input_size, 128), 128)
        self.h_pad = max(_round_up(hidden_size, 128), 128)

        # Padded weights: zero rows/cols outside the real extents so padded
        # hidden lanes stay exactly 0 through the recurrence.
        self.wx_pad = (
            jnp.zeros((self.i_pad, self.h_pad), jnp.float32)
            .at[:input_size, :hidden_size].set(self.wx)
        )
        self.wh_pad = (
            jnp.zeros((self.h_pad, self.h_pad), jnp.float32)
            .at[:hidden_size, :hidden_size].set(self.wh)
        )
        # Bias pre-broadcast over the padded batch rows -> plain full-vreg add.
        self.bias_pad = (
            jnp.zeros((self.b_pad, self.h_pad), jnp.float32)
            .at[:, :hidden_size].set(jnp.broadcast_to(self.b, (self.b_pad, hidden_size)))
        )

        self._runs = {}  # (seq, batch) -> jitted pad + pallas_call + slice

    # ---- kernel plumbing -------------------------------------------------
    def _get_run(self, seq, batch):
        key = (seq, batch)
        if key not in self._runs:
            n_blk = pl.cdiv(seq, self.t_blk)
            seq_pad = n_blk * self.t_blk
            call = make_fused_rnn_call(seq_pad, self.t_blk, self.b_pad,
                                       self.i_pad, self.h_pad)
            in_sz, hid_sz = self.input_size, self.hidden_size
            b_pad, i_pad, h_pad = self.b_pad, self.i_pad, self.h_pad

            def run(xs, h, wx, wh, bias):
                # Pad, run, un-pad — all fused under one jit / XLA computation.
                x_p = jnp.zeros((seq_pad, b_pad, i_pad), jnp.float32)
                x_p = x_p.at[:seq, :batch, :in_sz].set(xs)
                h_p = jnp.zeros((b_pad, h_pad), jnp.float32)
                h_p = h_p.at[:batch, :hid_sz].set(h)
                h_seq = call(x_p, h_p, wx, wh, bias)
                out = h_seq[:seq, :batch, :hid_sz]
                return out, out[-1]

            self._runs[key] = jax.jit(run)
        return self._runs[key]

    # ---- public API ------------------------------------------------------
    def run_sequence(self, xs):
        """Run the whole recurrence in ONE pallas_call.

        xs: [seq, 1, input_size] -> per-step hidden states [seq, 1, hidden_size].
        Updates self.h to the final state (matching seq calls of forward()).
        """
        seq, batch, _ = xs.shape
        out, h_last = self._get_run(seq, batch)(
            xs, self.h, self.wx_pad, self.wh_pad, self.bias_pad
        )
        self.h = h_last
        return out

    def forward(self, x):
        """Single step, mirroring the PyTorch module. x: [1, input_size]."""
        return self.run_sequence(x[None])[0]

    def zero_state(self):
        self.h = jnp.zeros_like(self.h)


if __name__ == "__main__":
    input_size = 16
    hidden_size = 32
    seq = 8

    key = jax.random.PRNGKey(0)
    kparams, kx = jax.random.split(key)

    cell = RecurrentCell(input_size, hidden_size, kparams)
    xs = jax.random.normal(kx, (seq, 1, input_size), jnp.float32)

    # Full recurrence in a single fused kernel launch.
    outs = jax.block_until_ready(cell.run_sequence(xs))

    # Pure-JAX reference recurrence.
    h = jnp.zeros((1, hidden_size), jnp.float32)
    refs = []
    for t in range(seq):
        h = jnp.tanh(xs[t] @ cell.wx + h @ cell.wh + cell.b[None, :])
        refs.append(h)
    ref = jax.block_until_ready(jnp.stack(refs))

    assert outs.shape == (seq, 1, hidden_size)
    assert jnp.allclose(outs, ref, atol=1e-5, rtol=1e-5), "sequence mismatch vs reference"
    assert jnp.allclose(cell.h, ref[-1], atol=1e-5, rtol=1e-5), "final state mismatch"

    # Also exercise the stateful single-step path (same fused kernel, seq padded to T_BLK).
    cell.zero_state()
    h1 = jax.block_until_ready(cell.forward(xs[0]))
    assert jnp.allclose(h1, ref[0], atol=1e-5, rtol=1e-5), "single-step mismatch"

    print("KERNEL_OK")
</pallas_src>

<mosaic_0001>
module attributes {stable_mosaic.version = 11 : i64} {
  func.func @_fused_rnn_kernel(%arg0: i32, %arg1: memref<8x8x128xf32, #tpu.memory_space<vmem>>, %arg2: memref<8x128xf32, #tpu.memory_space<vmem>>, %arg3: memref<128x128xf32, #tpu.memory_space<vmem>>, %arg4: memref<128x128xf32, #tpu.memory_space<vmem>>, %arg5: memref<8x128xf32, #tpu.memory_space<vmem>>, %arg6: memref<8x8x128xf32, #tpu.memory_space<vmem>>, %arg7: memref<8x128xf32, #tpu.memory_space<vmem>>) attributes {dimension_semantics = [#tpu.dimension_semantics<arbitrary>], iteration_bounds = array<i64: 1>, scalar_prefetch = 0 : i64, scratch_operands = 1 : i64, tpu.core_type = #tpu.core_type<tc>, window_params = [{transform_indices = @transform_0, window_bounds = array<i64: 8, 8, 128>}, {pipeline_mode = #tpu.pipeline_mode<synchronous>, transform_indices = @transform_1, window_bounds = array<i64: 8, 128>}, {pipeline_mode = #tpu.pipeline_mode<synchronous>, transform_indices = @transform_2, window_bounds = array<i64: 128, 128>}, {pipeline_mode = #tpu.pipeline_mode<synchronous>, transform_indices = @transform_3, window_bounds = array<i64: 128, 128>}, {pipeline_mode = #tpu.pipeline_mode<synchronous>, transform_indices = @transform_4, window_bounds = array<i64: 8, 128>}, {transform_indices = @transform_5, window_bounds = array<i64: 8, 8, 128>}]} {
    %c0_i32 = arith.constant 0 : i32
    %0 = arith.cmpi eq, %arg0, %c0_i32 : i32
    %1 = arith.extui %0 : i1 to i32
    %c0_i32_0 = arith.constant 0 : i32
    %2 = arith.cmpi ne, %1, %c0_i32_0 : i32
    scf.if %2 {
      %c0_71 = arith.constant 0 : index
      %c0_72 = arith.constant 0 : index
      %103 = vector.load %arg2[%c0_71, %c0_72] : memref<8x128xf32, #tpu.memory_space<vmem>>, vector<8x128xf32>
      %c0_73 = arith.constant 0 : index
      %c0_74 = arith.constant 0 : index
      %104 = vector.load %arg7[%c0_73, %c0_74] : memref<8x128xf32, #tpu.memory_space<vmem>>, vector<8x128xf32>
      tpu.vector_store %arg7[%c0_73, %c0_74], %103 {strides = array<i32>} : memref<8x128xf32, #tpu.memory_space<vmem>>, vector<8x128xf32>,
    } else {
    }
    %c0 = arith.constant 0 : index
    %c0_1 = arith.constant 0 : index
    %c0_2 = arith.constant 0 : index
    %3 = vector.load %arg1[%c0, %c0_1, %c0_2] : memref<8x8x128xf32, #tpu.memory_space<vmem>>, vector<8x8x128xf32>
    %4 = vector.shape_cast %3 : vector<8x8x128xf32> to vector<64x128xf32>
    %c0_3 = arith.constant 0 : index
    %c0_4 = arith.constant 0 : index
    %5 = vector.load %arg3[%c0_3, %c0_4] : memref<128x128xf32, #tpu.memory_space<vmem>>, vector<128x128xf32>
    %cst = arith.constant dense<0.000000e+00> : vector<64x128xf32>
    %6 = tpu.matmul %4, %5, %cst {dimension_numbers = #tpu.dot_dimension_numbers<[1], [0], [0], [1], [0, 0, 1, 1], [], []>} : vector<64x128xf32>, vector<128x128xf32>, vector<64x128xf32> -> vector<64x128xf32>
    %7 = vector.shape_cast %6 : vector<64x128xf32> to vector<8x8x128xf32>
    %c0_5 = arith.constant 0 : index
    %c0_6 = arith.constant 0 : index
    %8 = vector.load %arg5[%c0_5, %c0_6] : memref<8x128xf32, #tpu.memory_space<vmem>>, vector<8x128xf32>
    %9 = vector.shape_cast %8 : vector<8x128xf32> to vector<1x8x128xf32>
    %10 = vector.broadcast %9 : vector<1x8x128xf32> to vector<8x8x128xf32>
    %11 = arith.addf %7, %10 : vector<8x8x128xf32>
    %c0_7 = arith.constant 0 : index
    %c0_8 = arith.constant 0 : index
    %c0_9 = arith.constant 0 : index
    %12 = vector.load %arg6[%c0_7, %c0_8, %c0_9] : memref<8x8x128xf32, #tpu.memory_space<vmem>>, vector<8x8x128xf32>
    tpu.vector_store %arg6[%c0_7, %c0_8, %c0_9], %11 {strides = array<i32>} : memref<8x8x128xf32, #tpu.memory_space<vmem>>, vector<8x8x128xf32>,
    %c0_10 = arith.constant 0 : index
    %c0_11 = arith.constant 0 : index
    %13 = vector.load %arg7[%c0_10, %c0_11] : memref<8x128xf32, #tpu.memory_space<vmem>>, vector<8x128xf32>
    %c0_i32_12 = arith.constant 0 : i32
    %14 = arith.index_cast %c0_i32_12 : i32 to index
    %c0_13 = arith.constant 0 : index
    %c0_14 = arith.constant 0 : index
    %15 = vector.load %arg6[%14, %c0_13, %c0_14] : memref<8x8x128xf32, #tpu.memory_space<vmem>>, vector<1x8x128xf32>
    %16 = vector.shape_cast %15 : vector<1x8x128xf32> to vector<8x128xf32>
    %c0_15 = arith.constant 0 : index
    %c0_16 = arith.constant 0 : index
    %17 = vector.load %arg4[%c0_15, %c0_16] : memref<128x128xf32, #tpu.memory_space<vmem>>, vector<128x128xf32>
    %cst_17 = arith.constant dense<0.000000e+00> : vector<8x128xf32>
    %18 = tpu.matmul %13, %17, %cst_17 {dimension_numbers = #tpu.dot_dimension_numbers<[1], [0], [0], [1], [0, 0, 1, 1], [], []>} : vector<8x128xf32>, vector<128x128xf32>, vector<8x128xf32> -> vector<8x128xf32>
    %19 = arith.addf %16, %18 : vector<8x128xf32>
    %20 = math.tanh %19 : vector<8x128xf32>
    %21 = arith.index_cast %c0_i32_12 : i32 to index
    %c0_18 = arith.constant 0 : index
    %c0_19 = arith.constant 0 : index
    %22 = vector.load %arg6[%21, %c0_18, %c0_19] : memref<8x8x128xf32, #tpu.memory_space<vmem>>, vector<1x8x128xf32>
    %23 = vector.shape_cast %22 : vector<1x8x128xf32> to vector<8x128xf32>
    %24 = vector.shape_cast %20 : vector<8x128xf32> to vector<1x8x128xf32>
    tpu.vector_store %arg6[%21, %c0_18, %c0_19], %24 {strides = array<i32>} : memref<8x8x128xf32, #tpu.memory_space<vmem>>, vector<1x8x128xf32>,
    %c1_i32 = arith.constant 1 : i32
    %25 = arith.index_cast %c1_i32 : i32 to index
    %c0_20 = arith.constant 0 : index
    %c0_21 = arith.constant 0 : index
    %26 = vector.load %arg6[%25, %c0_20, %c0_21] : memref<8x8x128xf32, #tpu.memory_space<vmem>>, vector<1x8x128xf32>
    %27 = vector.shape_cast %26 : vector<1x8x128xf32> to vector<8x128xf32>
    %c0_22 = arith.constant 0 : index
    %c0_23 = arith.constant 0 : index
    %28 = vector.load %arg4[%c0_22, %c0_23] : memref<128x128xf32, #tpu.memory_space<vmem>>, vector<128x128xf32>
    %cst_24 = arith.constant dense<0.000000e+00> : vector<8x128xf32>
    %29 = tpu.matmul %20, %28, %cst_24 {dimension_numbers = #tpu.dot_dimension_numbers<[1], [0], [0], [1], [0, 0, 1, 1], [], []>} : vector<8x128xf32>, vector<128x128xf32>, vector<8x128xf32> -> vector<8x128xf32>
    %30 = arith.addf %27, %29 : vector<8x128xf32>
    %31 = math.tanh %30 : vector<8x128xf32>
    %32 = arith.index_cast %c1_i32 : i32 to index
    %c0_25 = arith.constant 0 : index
    %c0_26 = arith.constant 0 : index
    %33 = vector.load %arg6[%32, %c0_25, %c0_26] : memref<8x8x128xf32, #tpu.memory_space<vmem>>, vector<1x8x128xf32>
    %34 = vector.shape_cast %33 : vector<1x8x128xf32> to vector<8x128xf32>
    %35 = vector.shape_cast %31 : vector<8x128xf32> to vector<1x8x128xf32>
    tpu.vector_store %arg6[%32, %c0_25, %c0_26], %35 {strides = array<i32>} : memref<8x8x128xf32, #tpu.memory_space<vmem>>, vector<1x8x128xf32>,
    %c2_i32 = arith.constant 2 : i32
    %36 = arith.index_cast %c2_i32 : i32 to index
    %c0_27 = arith.constant 0 : index
    %c0_28 = arith.constant 0 : index
    %37 = vector.load %arg6[%36, %c0_27, %c0_28] : memref<8x8x128xf32, #tpu.memory_space<vmem>>, vector<1x8x128xf32>
    %38 = vector.shape_cast %37 : vector<1x8x128xf32> to vector<8x128xf32>
    %c0_29 = arith.constant 0 : index
    %c0_30 = arith.constant 0 : index
    %39 = vector.load %arg4[%c0_29, %c0_30] : memref<128x128xf32, #tpu.memory_space<vmem>>, vector<128x128xf32>
    %cst_31 = arith.constant dense<0.000000e+00> : vector<8x128xf32>
    %40 = tpu.matmul %31, %39, %cst_31 {dimension_numbers = #tpu.dot_dimension_numbers<[1], [0], [0], [1], [0, 0, 1, 1], [], []>} : vector<8x128xf32>, vector<128x128xf32>, vector<8x128xf32> -> vector<8x128xf32>
    %41 = arith.addf %38, %40 : vector<8x128xf32>
    %42 = math.tanh %41 : vector<8x128xf32>
    %43 = arith.index_cast %c2_i32 : i32 to index
    %c0_32 = arith.constant 0 : index
    %c0_33 = arith.constant 0 : index
    %44 = vector.load %arg6[%43, %c0_32, %c0_33] : memref<8x8x128xf32, #tpu.memory_space<vmem>>, vector<1x8x128xf32>
    %45 = vector.shape_cast %44 : vector<1x8x128xf32> to vector<8x128xf32>
    %46 = vector.shape_cast %42 : vector<8x128xf32> to vector<1x8x128xf32>
    tpu.vector_store %arg6[%43, %c0_32, %c0_33], %46 {strides = array<i32>} : memref<8x8x128xf32, #tpu.memory_space<vmem>>, vector<1x8x128xf32>,
    %c3_i32 = arith.constant 3 : i32
    %47 = arith.index_cast %c3_i32 : i32 to index
    %c0_34 = arith.constant 0 : index
    %c0_35 = arith.constant 0 : index
    %48 = vector.load %arg6[%47, %c0_34, %c0_35] : memref<8x8x128xf32, #tpu.memory_space<vmem>>, vector<1x8x128xf32>
    %49 = vector.shape_cast %48 : vector<1x8x128xf32> to vector<8x128xf32>
    %c0_36 = arith.constant 0 : index
    %c0_37 = arith.constant 0 : index
    %50 = vector.load %arg4[%c0_36, %c0_37] : memref<128x128xf32, #tpu.memory_space<vmem>>, vector<128x128xf32>
    %cst_38 = arith.constant dense<0.000000e+00> : vector<8x128xf32>
    %51 = tpu.matmul %42, %50, %cst_38 {dimension_numbers = #tpu.dot_dimension_numbers<[1], [0], [0], [1], [0, 0, 1, 1], [], []>} : vector<8x128xf32>, vector<128x128xf32>, vector<8x128xf32> -> vector<8x128xf32>
    %52 = arith.addf %49, %51 : vector<8x128xf32>
    %53 = math.tanh %52 : vector<8x128xf32>
    %54 = arith.index_cast %c3_i32 : i32 to index
    %c0_39 = arith.constant 0 : index
    %c0_40 = arith.constant 0 : index
    %55 = vector.load %arg6[%54, %c0_39, %c0_40] : memref<8x8x128xf32, #tpu.memory_space<vmem>>, vector<1x8x128xf32>
    %56 = vector.shape_cast %55 : vector<1x8x128xf32> to vector<8x128xf32>
    %57 = vector.shape_cast %53 : vector<8x128xf32> to vector<1x8x128xf32>
    tpu.vector_store %arg6[%54, %c0_39, %c0_40], %57 {strides = array<i32>} : memref<8x8x128xf32, #tpu.memory_space<vmem>>, vector<1x8x128xf32>,
    %c4_i32 = arith.constant 4 : i32
    %58 = arith.index_cast %c4_i32 : i32 to index
    %c0_41 = arith.constant 0 : index
    %c0_42 = arith.constant 0 : index
    %59 = vector.load %arg6[%58, %c0_41, %c0_42] : memref<8x8x128xf32, #tpu.memory_space<vmem>>, vector<1x8x128xf32>
    %60 = vector.shape_cast %59 : vector<1x8x128xf32> to vector<8x128xf32>
    %c0_43 = arith.constant 0 : index
    %c0_44 = arith.constant 0 : index
    %61 = vector.load %arg4[%c0_43, %c0_44] : memref<128x128xf32, #tpu.memory_space<vmem>>, vector<128x128xf32>
    %cst_45 = arith.constant dense<0.000000e+00> : vector<8x128xf32>
    %62 = tpu.matmul %53, %61, %cst_45 {dimension_numbers = #tpu.dot_dimension_numbers<[1], [0], [0], [1], [0, 0, 1, 1], [], []>} : vector<8x128xf32>, vector<128x128xf32>, vector<8x128xf32> -> vector<8x128xf32>
    %63 = arith.addf %60, %62 : vector<8x128xf32>
    %64 = math.tanh %63 : vector<8x128xf32>
    %65 = arith.index_cast %c4_i32 : i32 to index
    %c0_46 = arith.constant 0 : index
    %c0_47 = arith.constant 0 : index
    %66 = vector.load %arg6[%65, %c0_46, %c0_47] : memref<8x8x128xf32, #tpu.memory_space<vmem>>, vector<1x8x128xf32>
    %67 = vector.shape_cast %66 : vector<1x8x128xf32> to vector<8x128xf32>
    %68 = vector.shape_cast %64 : vector<8x128xf32> to vector<1x8x128xf32>
    tpu.vector_store %arg6[%65, %c0_46, %c0_47], %68 {strides = array<i32>} : memref<8x8x128xf32, #tpu.memory_space<vmem>>, vector<1x8x128xf32>,
    %c5_i32 = arith.constant 5 : i32
    %69 = arith.index_cast %c5_i32 : i32 to index
    %c0_48 = arith.constant 0 : index
    %c0_49 = arith.constant 0 : index
    %70 = vector.load %arg6[%69, %c0_48, %c0_49] : memref<8x8x128xf32, #tpu.memory_space<vmem>>, vector<1x8x128xf32>
    %71 = vector.shape_cast %70 : vector<1x8x128xf32> to vector<8x128xf32>
    %c0_50 = arith.constant 0 : index
    %c0_51 = arith.constant 0 : index
    %72 = vector.load %arg4[%c0_50, %c0_51] : memref<128x128xf32, #tpu.memory_space<vmem>>, vector<128x128xf32>
    %cst_52 = arith.constant dense<0.000000e+00> : vector<8x128xf32>
    %73 = tpu.matmul %64, %72, %cst_52 {dimension_numbers = #tpu.dot_dimension_numbers<[1], [0], [0], [1], [0, 0, 1, 1], [], []>} : vector<8x128xf32>, vector<128x128xf32>, vector<8x128xf32> -> vector<8x128xf32>
    %74 = arith.addf %71, %73 : vector<8x128xf32>
    %75 = math.tanh %74 : vector<8x128xf32>
    %76 = arith.index_cast %c5_i32 : i32 to index
    %c0_53 = arith.constant 0 : index
    %c0_54 = arith.constant 0 : index
    %77 = vector.load %arg6[%76, %c0_53, %c0_54] : memref<8x8x128xf32, #tpu.memory_space<vmem>>, vector<1x8x128xf32>
    %78 = vector.shape_cast %77 : vector<1x8x128xf32> to vector<8x128xf32>
    %79 = vector.shape_cast %75 : vector<8x128xf32> to vector<1x8x128xf32>
    tpu.vector_store %arg6[%76, %c0_53, %c0_54], %79 {strides = array<i32>} : memref<8x8x128xf32, #tpu.memory_space<vmem>>, vector<1x8x128xf32>,
    %c6_i32 = arith.constant 6 : i32
    %80 = arith.index_cast %c6_i32 : i32 to index
    %c0_55 = arith.constant 0 : index
    %c0_56 = arith.constant 0 : index
    %81 = vector.load %arg6[%80, %c0_55, %c0_56] : memref<8x8x128xf32, #tpu.memory_space<vmem>>, vector<1x8x128xf32>
    %82 = vector.shape_cast %81 : vector<1x8x128xf32> to vector<8x128xf32>
    %c0_57 = arith.constant 0 : index
    %c0_58 = arith.constant 0 : index
    %83 = vector.load %arg4[%c0_57, %c0_58] : memref<128x128xf32, #tpu.memory_space<vmem>>, vector<128x128xf32>
    %cst_59 = arith.constant dense<0.000000e+00> : vector<8x128xf32>
    %84 = tpu.matmul %75, %83, %cst_59 {dimension_numbers = #tpu.dot_dimension_numbers<[1], [0], [0], [1], [0, 0, 1, 1], [], []>} : vector<8x128xf32>, vector<128x128xf32>, vector<8x128xf32> -> vector<8x128xf32>
    %85 = arith.addf %82, %84 : vector<8x128xf32>
    %86 = math.tanh %85 : vector<8x128xf32>
    %87 = arith.index_cast %c6_i32 : i32 to index
    %c0_60 = arith.constant 0 : index
    %c0_61 = arith.constant 0 : index
    %88 = vector.load %arg6[%87, %c0_60, %c0_61] : memref<8x8x128xf32, #tpu.memory_space<vmem>>, vector<1x8x128xf32>
    %89 = vector.shape_cast %88 : vector<1x8x128xf32> to vector<8x128xf32>
    %90 = vector.shape_cast %86 : vector<8x128xf32> to vector<1x8x128xf32>
    tpu.vector_store %arg6[%87, %c0_60, %c0_61], %90 {strides = array<i32>} : memref<8x8x128xf32, #tpu.memory_space<vmem>>, vector<1x8x128xf32>,
    %c7_i32 = arith.constant 7 : i32
    %91 = arith.index_cast %c7_i32 : i32 to index
    %c0_62 = arith.constant 0 : index
    %c0_63 = arith.constant 0 : index
    %92 = vector.load %arg6[%91, %c0_62, %c0_63] : memref<8x8x128xf32, #tpu.memory_space<vmem>>, vector<1x8x128xf32>
    %93 = vector.shape_cast %92 : vector<1x8x128xf32> to vector<8x128xf32>
    %c0_64 = arith.constant 0 : index
    %c0_65 = arith.constant 0 : index
    %94 = vector.load %arg4[%c0_64, %c0_65] : memref<128x128xf32, #tpu.memory_space<vmem>>, vector<128x128xf32>
    %cst_66 = arith.constant dense<0.000000e+00> : vector<8x128xf32>
    %95 = tpu.matmul %86, %94, %cst_66 {dimension_numbers = #tpu.dot_dimension_numbers<[1], [0], [0], [1], [0, 0, 1, 1], [], []>} : vector<8x128xf32>, vector<128x128xf32>, vector<8x128xf32> -> vector<8x128xf32>
    %96 = arith.addf %93, %95 : vector<8x128xf32>
    %97 = math.tanh %96 : vector<8x128xf32>
    %98 = arith.index_cast %c7_i32 : i32 to index
    %c0_67 = arith.constant 0 : index
    %c0_68 = arith.constant 0 : index
    %99 = vector.load %arg6[%98, %c0_67, %c0_68] : memref<8x8x128xf32, #tpu.memory_space<vmem>>, vector<1x8x128xf32>
    %100 = vector.shape_cast %99 : vector<1x8x128xf32> to vector<8x128xf32>
    %101 = vector.shape_cast %97 : vector<8x128xf32> to vector<1x8x128xf32>
    tpu.vector_store %arg6[%98, %c0_67, %c0_68], %101 {strides = array<i32>} : memref<8x8x128xf32, #tpu.memory_space<vmem>>, vector<1x8x128xf32>,
    %c8_i32 = arith.constant 8 : i32
    %c0_69 = arith.constant 0 : index
    %c0_70 = arith.constant 0 : index
    %102 = vector.load %arg7[%c0_69, %c0_70] : memref<8x128xf32, #tpu.memory_space<vmem>>, vector<8x128xf32>
    tpu.vector_store %arg7[%c0_69, %c0_70], %97 {strides = array<i32>} : memref<8x128xf32, #tpu.memory_space<vmem>>, vector<8x128xf32>,
    return
  }
  func.func @transform_0(%arg0: i32) -> (i32, i32, i32) {
    %c0_i32 = arith.constant 0 : i32
    %c0_i32_0 = arith.constant 0 : i32
    %c0_i32_1 = arith.constant 0 : i32
    return %arg0, %c0_i32, %c0_i32_0 : i32, i32, i32
  }
  func.func @transform_1(%arg0: i32) -> (i32, i32) {
    %c0_i32 = arith.constant 0 : i32
    %c0_i32_0 = arith.constant 0 : i32
    %c0_i32_1 = arith.constant 0 : i32
    return %c0_i32, %c0_i32_0 : i32, i32
  }
  func.func @transform_2(%arg0: i32) -> (i32, i32) {
    %c0_i32 = arith.constant 0 : i32
    %c0_i32_0 = arith.constant 0 : i32
    %c0_i32_1 = arith.constant 0 : i32
    return %c0_i32, %c0_i32_0 : i32, i32
  }
  func.func @transform_3(%arg0: i32) -> (i32, i32) {
    %c0_i32 = arith.constant 0 : i32
    %c0_i32_0 = arith.constant 0 : i32
    %c0_i32_1 = arith.constant 0 : i32
    return %c0_i32, %c0_i32_0 : i32, i32
  }
  func.func @transform_4(%arg0: i32) -> (i32, i32) {
    %c0_i32 = arith.constant 0 : i32
    %c0_i32_0 = arith.constant 0 : i32
    %c0_i32_1 = arith.constant 0 : i32
    return %c0_i32, %c0_i32_0 : i32, i32
  }
  func.func @transform_5(%arg0: i32) -> (i32, i32, i32) {
    %c0_i32 = arith.constant 0 : i32
    %c0_i32_0 = arith.constant 0 : i32
    %c0_i32_1 = arith.constant 0 : i32
    return %arg0, %c0_i32, %c0_i32_0 : i32, i32, i32
  }
}

</mosaic_0001>

<llo_original>
// kernel: run.1
$region0: #{run.1}
  #allocation0 [shape = 'u32[]', space=smem, size = 0x4, offset = 0x4, fixed_abs, tag = 'smem constant byte address 0x4 - core index']
  #allocation1 [shape = 'u32[72,128]{1,0:T(1,128)}', space=vmem, size = 0x9000, scoped, tag = 'internal scratch']
  #allocation2 [shape = 'f32[8,128]{1,0:T(8,128)}', space=vmem, size = 0x1000, scoped, tag = 'scratch operand']
  %s0 = inlined_call_operand.vmem [shape: f32[8,8,128], index: 0, kind: input, shape index: {}]
  %s1 = inlined_call_operand.vmem [shape: f32[8,128], index: 1, kind: input, shape index: {}]
  %s2 = inlined_call_operand.hbm [shape: f32[128,128], index: 2, kind: input, shape index: {}]
  %s3 = inlined_call_operand.hbm [shape: f32[128,128], index: 3, kind: input, shape index: {}]
  %s4 = inlined_call_operand.vmem [shape: f32[8,128], index: 4, kind: input, shape index: {}]
  %s5 = inlined_call_operand.vmem [shape: f32[8,8,128], index: 5, kind: output, shape index: {}]
  %s6 = sld [smem:[#allocation0]]
  $region42: #{run.1} parent=0
    _
  %s8 = ssub.s32 1, %s6
  %s9 = scalar_select 0, %s8, %s6
  $region1: #{run.1} parent=0
    #allocation3 [shape = 'u8[65536]{0}', space=vmem, size = 0x10000, scoped, tag = 'input window, operand 2, single buffered']
    #allocation4 [shape = 's32[1]{0}', space=sflag, size = 0x4, scoped, tag = 'scoped memory for run.1']
    #allocation5 [shape = 'u8[65536]{0}', space=vmem, size = 0x10000, scoped, tag = 'input window, operand 3, single buffered']
    #allocation6 [shape = 's32[1]{0}', space=sflag, size = 0x4, scoped, tag = 'scoped memory for run.1']
    %10 = vsyncpa [#allocation4], 0
    %11 = vsyncpa [#allocation6], 0
    // Predicated region
    $region2: #{run.1} parent=1 // pred_check
      _
    $region3: #{run.1} parent=1 // pred_check_branch
      %13 = sbr.rel (0) target = $region5
    $region4: #{run.1} parent=1 // pred_region
      _
    $region5: #{run.1} parent=1 // pred_fallthru
      _
    // Predicated region
    $region6: #{run.1} parent=1 // pred_check
      _
    $region7: #{run.1} parent=1 // pred_check_branch
      %15 = sbr.rel (0) target = $region9
    $region8: #{run.1} parent=1 // pred_region
      _
    $region9: #{run.1} parent=1 // pred_fallthru
      _
    // Predicated region
    $region10: #{run.1} parent=1 // pred_check
      _
    $region11: #{run.1} parent=1 // pred_check_branch
      %17 = sbr.rel (0) target = $region13
    $region12: #{run.1} parent=1 // pred_region
      %19 = vsyncadd [#allocation4], 0
      %s20 = sshll.u32 %s2, 4
      %s21 = int_to_ptr.hbm [resolvable:$true] %s20
      %s22 = sshll.u32 [#allocation3], 4
      %s23 = int_to_ptr.vmem [resolvable:$true] %s22
      %28 = dma.hbm_to_vmem [thread:$0]  %s21, 2048, %s23, [#allocation4], 128, 128, 8
    $region13: #{run.1} parent=1 // pred_fallthru
      _
    // Predicated region
    $region14: #{run.1} parent=1 // pred_check
      _
    $region15: #{run.1} parent=1 // pred_check_branch
      %30 = sbr.rel (0) target = $region17
    $region16: #{run.1} parent=1 // pred_region
      %32 = vsyncadd [#allocation6], 0
      %s33 = sshll.u32 %s3, 4
      %s34 = int_to_ptr.hbm [resolvable:$true] %s33
      %s35 = sshll.u32 [#allocation5], 4
      %s36 = int_to_ptr.vmem [resolvable:$true] %s35
      %41 = dma.hbm_to_vmem [thread:$0]  %s34, 2048, %s36, [#allocation6], 128, 128, 8
    $region17: #{run.1} parent=1 // pred_fallthru
      _
    // Predicated region
    $region18: #{run.1} parent=1 // pred_check
      _
    $region19: #{run.1} parent=1 // pred_check_branch
      %43 = sbr.rel (0) target = $region21
    $region20: #{run.1} parent=1 // pred_region
      _
    $region21: #{run.1} parent=1 // pred_fallthru
      _
    // Predicated region
    $region22: #{run.1} parent=1 // pred_check
      _
    $region23: #{run.1} parent=1 // pred_check_branch
      %45 = sbr.rel (0) target = $region25
    $region24: #{run.1} parent=1 // pred_region
      %47 = dma.done [#allocation4], 2048
    $region25: #{run.1} parent=1 // pred_fallthru
      _
    // Predicated region
    $region26: #{run.1} parent=1 // pred_check
      _
    $region27: #{run.1} parent=1 // pred_check_branch
      %49 = sbr.rel (0) target = $region29
    $region28: #{run.1} parent=1 // pred_region
      %51 = dma.done [#allocation6], 2048
    $region29: #{run.1} parent=1 // pred_fallthru
      _
    %p52 = scmp.eq.s32.totalorder 0, 0
    // Predicated region
    $region30: #{run.1} parent=1 // pred_check
      %p53 = pneg %p52
    $region31: #{run.1} parent=1 // pred_check_branch
      %55 = sbr.rel (%p53) target = $region33
    $region32: #{run.1} parent=1 // pred_region
      %v56 = vld [vmem:[%s1] sm:$0xff]
      %57 = vst [vmem:[#allocation2] sm:$0xff] %v56
    $region33: #{run.1} parent=1 // pred_fallthru
      _
    %v58 = vld [vmem:[%s0] sm:$0xff]
    %v59 = vld [vmem:[%s0 + $0x8] sm:$0xff]
    %v60 = vld [vmem:[%s0 + $0x10] sm:$0xff]
    %v61 = vld [vmem:[%s0 + $0x18] sm:$0xff]
    %v62 = vld [vmem:[%s0 + $0x20] sm:$0xff]
    %v63 = vld [vmem:[%s0 + $0x28] sm:$0xff]
    %v64 = vld [vmem:[%s0 + $0x30] sm:$0xff]
    %v65 = vld [vmem:[%s0 + $0x38] sm:$0xff]
    %v66 = vld [vmem:[#allocation3] sm:$0xff]
    %v67 = vld [vmem:[#allocation3 + $0x8] sm:$0xff]
    %v68 = vld [vmem:[#allocation3 + $0x10] sm:$0xff]
    %v69 = vld [vmem:[#allocation3 + $0x18] sm:$0xff]
    %v70 = vld [vmem:[#allocation3 + $0x20] sm:$0xff]
    %v71 = vld [vmem:[#allocation3 + $0x28] sm:$0xff]
    %v72 = vld [vmem:[#allocation3 + $0x30] sm:$0xff]
    %v73 = vld [vmem:[#allocation3 + $0x38] sm:$0xff]
    %v74 = vld [vmem:[#allocation3 + $0x40] sm:$0xff]
    %v75 = vld [vmem:[#allocation3 + $0x48] sm:$0xff]
    %v76 = vld [vmem:[#allocation3 + $0x50] sm:$0xff]
    %v77 = vld [vmem:[#allocation3 + $0x58] sm:$0xff]
    %v78 = vld [vmem:[#allocation3 + $0x60] sm:$0xff]
    %v79 = vld [vmem:[#allocation3 + $0x68] sm:$0xff]
    %v80 = vld [vmem:[#allocation3 + $0x70] sm:$0xff]
    %v81 = vld [vmem:[#allocation3 + $0x78] sm:$0xff]
    %82 = vmatpush.msra.mxu0 %v81
    %83 = vmatpush.msra.mxu0 %v80
    %84 = vmatpush.msra.mxu0 %v79
    %85 = vmatpush.msra.mxu0 %v78
    %86 = vmatpush.msra.mxu0 %v77
    %87 = vmatpush.msra.mxu0 %v76
    %88 = vmatpush.msra.mxu0 %v75
    %89 = vmatpush.msra.mxu0 %v74
    %90 = vmatpush.msra.mxu0 %v73
    %91 = vmatpush.msra.mxu0 %v72
    %92 = vmatpush.msra.mxu0 %v71
    %93 = vmatpush.msra.mxu0 %v70
    %94 = vmatpush.msra.mxu0 %v69
    %95 = vmatpush.msra.mxu0 %v68
    %96 = vmatpush.msra.mxu0 %v67
    %97 = vmatpush.msra.mxu0 %v66
    %98 = vmatmul.f32.gmra.mxu0 %v58
    %v99 = vpop.f32.mrf.mxu0
    %v100 = vadd.f32 0.0, %v99
    %101 = vmatmul.f32.gmra.mxu0 %v59
    %v102 = vpop.f32.mrf.mxu0
    %v103 = vadd.f32 0.0, %v102
    %104 = vmatmul.f32.gmra.mxu0 %v60
    %v105 = vpop.f32.mrf.mxu0
    %v106 = vadd.f32 0.0, %v105
    %107 = vmatmul.f32.gmra.mxu0 %v61
    %v108 = vpop.f32.mrf.mxu0
    %v109 = vadd.f32 0.0, %v108
    %110 = vmatmul.f32.gmra.mxu0 %v62
    %v111 = vpop.f32.mrf.mxu0
    %v112 = vadd.f32 0.0, %v111
    %113 = vmatmul.f32.gmra.mxu0 %v63
    %v114 = vpop.f32.mrf.mxu0
    %v115 = vadd.f32 0.0, %v114
    %116 = vmatmul.f32.gmra.mxu0 %v64
    %v117 = vpop.f32.mrf.mxu0
    %v118 = vadd.f32 0.0, %v117
    %119 = vmatmul.f32.gmra.mxu0 %v65
    %v120 = vpop.f32.mrf.mxu0
    %v121 = vadd.f32 0.0, %v120
    %122 = vdwg.mxu0
    %v123 = vld [vmem:[%s4] sm:$0xff]
    %v124 = vadd.f32 %v100, %v123
    %v125 = vadd.f32 %v103, %v123
    %v126 = vadd.f32 %v106, %v123
    %v127 = vadd.f32 %v109, %v123
    %v128 = vadd.f32 %v112, %v123
    %v129 = vadd.f32 %v115, %v123
    %v130 = vadd.f32 %v118, %v123
    %v131 = vadd.f32 %v121, %v123
    %132 = vst [vmem:[%s5] sm:$0xff] %v124
    %133 = vst [vmem:[%s5 + $0x8] sm:$0xff] %v125
    %134 = vst [vmem:[%s5 + $0x10] sm:$0xff] %v126
    %135 = vst [vmem:[%s5 + $0x18] sm:$0xff] %v127
    %136 = vst [vmem:[%s5 + $0x20] sm:$0xff] %v128
    %137 = vst [vmem:[%s5 + $0x28] sm:$0xff] %v129
    %138 = vst [vmem:[%s5 + $0x30] sm:$0xff] %v130
    %139 = vst [vmem:[%s5 + $0x38] sm:$0xff] %v131
    %v140 = vld [vmem:[#allocation2] sm:$0xff]
    %v141 = vld [vmem:[%s5] sm:$0xff]
    %v142 = vld [vmem:[#allocation5] sm:$0xff]
    %v143 = vld [vmem:[#allocation5 + $0x8] sm:$0xff]
    %v144 = vld [vmem:[#allocation5 + $0x10] sm:$0xff]
    %v145 = vld [vmem:[#allocation5 + $0x18] sm:$0xff]
    %v146 = vld [vmem:[#allocation5 + $0x20] sm:$0xff]
    %v147 = vld [vmem:[#allocation5 + $0x28] sm:$0xff]
    %v148 = vld [vmem:[#allocation5 + $0x30] sm:$0xff]
    %v149 = vld [vmem:[#allocation5 + $0x38] sm:$0xff]
    %v150 = vld [vmem:[#allocation5 + $0x40] sm:$0xff]
    %v151 = vld [vmem:[#allocation5 + $0x48] sm:$0xff]
    %v152 = vld [vmem:[#allocation5 + $0x50] sm:$0xff]
    %v153 = vld [vmem:[#allocation5 + $0x58] sm:$0xff]
    %v154 = vld [vmem:[#allocation5 + $0x60] sm:$0xff]
    %v155 = vld [vmem:[#allocation5 + $0x68] sm:$0xff]
    %v156 = vld [vmem:[#allocation5 + $0x70] sm:$0xff]
    %v157 = vld [vmem:[#allocation5 + $0x78] sm:$0xff]
    %158 = vmatpush.msra.mxu0 %v157
    %159 = vmatpush.msra.mxu0 %v156
    %160 = vmatpush.msra.mxu0 %v155
    %161 = vmatpush.msra.mxu0 %v154
    %162 = vmatpush.msra.mxu0 %v153
    %163 = vmatpush.msra.mxu0 %v152
    %164 = vmatpush.msra.mxu0 %v151
    %165 = vmatpush.msra.mxu0 %v150
    %166 = vmatpush.msra.mxu0 %v149
    %167 = vmatpush.msra.mxu0 %v148
    %168 = vmatpush.msra.mxu0 %v147
    %169 = vmatpush.msra.mxu0 %v146
    %170 = vmatpush.msra.mxu0 %v145
    %171 = vmatpush.msra.mxu0 %v144
    %172 = vmatpush.msra.mxu0 %v143
    %173 = vmatpush.msra.mxu0 %v142
    %174 = vmatmul.f32.gmra.mxu0 %v140
    %v175 = vpop.f32.mrf.mxu0
    %v176 = vadd.f32 0.0, %v175
    %177 = vdwg.mxu0
    %v178 = vadd.f32 %v141, %v176
    %v179 = vtanh.pop %v178
    %180 = vst [vmem:[%s5] sm:$0xff] %v179
    %s181 = scalar_lea.vmem %s5, 8
    %v182 = vld [vmem:[%s181] sm:$0xff]
    %v183 = vld [vmem:[#allocation5] sm:$0xff]
    %v184 = vld [vmem:[#allocation5 + $0x8] sm:$0xff]
    %v185 = vld [vmem:[#allocation5 + $0x10] sm:$0xff]
    %v186 = vld [vmem:[#allocation5 + $0x18] sm:$0xff]
    %v187 = vld [vmem:[#allocation5 + $0x20] sm:$0xff]
    %v188 = vld [vmem:[#allocation5 + $0x28] sm:$0xff]
    %v189 = vld [vmem:[#allocation5 + $0x30] sm:$0xff]
    %v190 = vld [vmem:[#allocation5 + $0x38] sm:$0xff]
    %v191 = vld [vmem:[#allocation5 + $0x40] sm:$0xff]
    %v192 = vld [vmem:[#allocation5 + $0x48] sm:$0xff]
    %v193 = vld [vmem:[#allocation5 + $0x50] sm:$0xff]
    %v194 = vld [vmem:[#allocation5 + $0x58] sm:$0xff]
    %v195 = vld [vmem:[#allocation5 + $0x60] sm:$0xff]
    %v196 = vld [vmem:[#allocation5 + $0x68] sm:$0xff]
    %v197 = vld [vmem:[#allocation5 + $0x70] sm:$0xff]
    %v198 = vld [vmem:[#allocation5 + $0x78] sm:$0xff]
    %199 = vmatpush.msra.mxu0 %v198
    %200 = vmatpush.msra.mxu0 %v197
    %201 = vmatpush.msra.mxu0 %v196
    %202 = vmatpush.msra.mxu0 %v195
    %203 = vmatpush.msra.mxu0 %v194
    %204 = vmatpush.msra.mxu0 %v193
    %205 = vmatpush.msra.mxu0 %v192
    %206 = vmatpush.msra.mxu0 %v191
    %207 = vmatpush.msra.mxu0 %v190
    %208 = vmatpush.msra.mxu0 %v189
    %209 = vmatpush.msra.mxu0 %v188
    %210 = vmatpush.msra.mxu0 %v187
    %211 = vmatpush.msra.mxu0 %v186
    %212 = vmatpush.msra.mxu0 %v185
    %213 = vmatpush.msra.mxu0 %v184
    %214 = vmatpush.msra.mxu0 %v183
    %215 = vmatmul.f32.gmra.mxu0 %v179
    %v216 = vpop.f32.mrf.mxu0
    %v217 = vadd.f32 0.0, %v216
    %218 = vdwg.mxu0
    %v219 = vadd.f32 %v182, %v217
    %v220 = vtanh.pop %v219
    %221 = vst [vmem:[%s181] sm:$0xff] %v220
    %s222 = scalar_lea.vmem %s5, 16
    %v223 = vld [vmem:[%s222] sm:$0xff]
    %v224 = vld [vmem:[#allocation5] sm:$0xff]
    %v225 = vld [vmem:[#allocation5 + $0x8] sm:$0xff]
    %v226 = vld [vmem:[#allocation5 + $0x10] sm:$0xff]
    %v227 = vld [vmem:[#allocation5 + $0x18] sm:$0xff]
    %v228 = vld [vmem:[#allocation5 + $0x20] sm:$0xff]
    %v229 = vld [vmem:[#allocation5 + $0x28] sm:$0xff]
    %v230 = vld [vmem:[#allocation5 + $0x30] sm:$0xff]
    %v231 = vld [vmem:[#allocation5 + $0x38] sm:$0xff]
    %v232 = vld [vmem:[#allocation5 + $0x40] sm:$0xff]
    %v233 = vld [vmem:[#allocation5 + $0x48] sm:$0xff]
    %v234 = vld [vmem:[#allocation5 + $0x50] sm:$0xff]
    %v235 = vld [vmem:[#allocation5 + $0x58] sm:$0xff]
    %v236 = vld [vmem:[#allocation5 + $0x60] sm:$0xff]
    %v237 = vld [vmem:[#allocation5 + $0x68] sm:$0xff]
    %v238 = vld [vmem:[#allocation5 + $0x70] sm:$0xff]
    %v239 = vld [vmem:[#allocation5 + $0x78] sm:$0xff]
    %240 = vmatpush.msra.mxu0 %v239
    %241 = vmatpush.msra.mxu0 %v238
    %242 = vmatpush.msra.mxu0 %v237
    %243 = vmatpush.msra.mxu0 %v236
    %244 = vmatpush.msra.mxu0 %v235
    %245 = vmatpush.msra.mxu0 %v234
    %246 = vmatpush.msra.mxu0 %v233
    %247 = vmatpush.msra.mxu0 %v232
    %248 = vmatpush.msra.mxu0 %v231
    %249 = vmatpush.msra.mxu0 %v230
    %250 = vmatpush.msra.mxu0 %v229
    %251 = vmatpush.msra.mxu0 %v228
    %252 = vmatpush.msra.mxu0 %v227
    %253 = vmatpush.msra.mxu0 %v226
    %254 = vmatpush.msra.mxu0 %v225
    %255 = vmatpush.msra.mxu0 %v224
    %256 = vmatmul.f32.gmra.mxu0 %v220
    %v257 = vpop.f32.mrf.mxu0
    %v258 = vadd.f32 0.0, %v257
    %259 = vdwg.mxu0
    %v260 = vadd.f32 %v223, %v258
    %v261 = vtanh.pop %v260
    %262 = vst [vmem:[%s222] sm:$0xff] %v261
    %s263 = scalar_lea.vmem %s5, 24
    %v264 = vld [vmem:[%s263] sm:$0xff]
    %v265 = vld [vmem:[#allocation5] sm:$0xff]
    %v266 = vld [vmem:[#allocation5 + $0x8] sm:$0xff]
    %v267 = vld [vmem:[#allocation5 + $0x10] sm:$0xff]
    %v268 = vld [vmem:[#allocation5 + $0x18] sm:$0xff]
    %v269 = vld [vmem:[#allocation5 + $0x20] sm:$0xff]
    %v270 = vld [vmem:[#allocation5 + $0x28] sm:$0xff]
    %v271 = vld [vmem:[#allocation5 + $0x30] sm:$0xff]
    %v272 = vld [vmem:[#allocation5 + $0x38] sm:$0xff]
    %v273 = vld [vmem:[#allocation5 + $0x40] sm:$0xff]
    %v274 = vld [vmem:[#allocation5 + $0x48] sm:$0xff]
    %v275 = vld [vmem:[#allocation5 + $0x50] sm:$0xff]
    %v276 = vld [vmem:[#allocation5 + $0x58] sm:$0xff]
    %v277 = vld [vmem:[#allocation5 + $0x60] sm:$0xff]
    %v278 = vld [vmem:[#allocation5 + $0x68] sm:$0xff]
    %v279 = vld [vmem:[#allocation5 + $0x70] sm:$0xff]
    %v280 = vld [vmem:[#allocation5 + $0x78] sm:$0xff]
    %281 = vmatpush.msra.mxu0 %v280
    %282 = vmatpush.msra.mxu0 %v279
    %283 = vmatpush.msra.mxu0 %v278
    %284 = vmatpush.msra.mxu0 %v277
    %285 = vmatpush.msra.mxu0 %v276
    %286 = vmatpush.msra.mxu0 %v275
    %287 = vmatpush.msra.mxu0 %v274
    %288 = vmatpush.msra.mxu0 %v273
    %289 = vmatpush.msra.mxu0 %v272
    %290 = vmatpush.msra.mxu0 %v271
    %291 = vmatpush.msra.mxu0 %v270
    %292 = vmatpush.msra.mxu0 %v269
    %293 = vmatpush.msra.mxu0 %v268
    %294 = vmatpush.msra.mxu0 %v267
    %295 = vmatpush.msra.mxu0 %v266
    %296 = vmatpush.msra.mxu0 %v265
    %297 = vmatmul.f32.gmra.mxu0 %v261
    %v298 = vpop.f32.mrf.mxu0
    %v299 = vadd.f32 0.0, %v298
    %300 = vdwg.mxu0
    %v301 = vadd.f32 %v264, %v299
    %v302 = vtanh.pop %v301
    %303 = vst [vmem:[%s263] sm:$0xff] %v302
    %s304 = scalar_lea.vmem %s5, 32
    %v305 = vld [vmem:[%s304] sm:$0xff]
    %v306 = vld [vmem:[#allocation5] sm:$0xff]
    %v307 = vld [vmem:[#allocation5 + $0x8] sm:$0xff]
    %v308 = vld [vmem:[#allocation5 + $0x10] sm:$0xff]
    %v309 = vld [vmem:[#allocation5 + $0x18] sm:$0xff]
    %v310 = vld [vmem:[#allocation5 + $0x20] sm:$0xff]
    %v311 = vld [vmem:[#allocation5 + $0x28] sm:$0xff]
    %v312 = vld [vmem:[#allocation5 + $0x30] sm:$0xff]
    %v313 = vld [vmem:[#allocation5 + $0x38] sm:$0xff]
    %v314 = vld [vmem:[#allocation5 + $0x40] sm:$0xff]
    %v315 = vld [vmem:[#allocation5 + $0x48] sm:$0xff]
    %v316 = vld [vmem:[#allocation5 + $0x50] sm:$0xff]
    %v317 = vld [vmem:[#allocation5 + $0x58] sm:$0xff]
    %v318 = vld [vmem:[#allocation5 + $0x60] sm:$0xff]
    %v319 = vld [vmem:[#allocation5 + $0x68] sm:$0xff]
    %v320 = vld [vmem:[#allocation5 + $0x70] sm:$0xff]
    %v321 = vld [vmem:[#allocation5 + $0x78] sm:$0xff]
    %322 = vmatpush.msra.mxu0 %v321
    %323 = vmatpush.msra.mxu0 %v320
    %324 = vmatpush.msra.mxu0 %v319
    %325 = vmatpush.msra.mxu0 %v318
    %326 = vmatpush.msra.mxu0 %v317
    %327 = vmatpush.msra.mxu0 %v316
    %328 = vmatpush.msra.mxu0 %v315
    %329 = vmatpush.msra.mxu0 %v314
    %330 = vmatpush.msra.mxu0 %v313
    %331 = vmatpush.msra.mxu0 %v312
    %332 = vmatpush.msra.mxu0 %v311
    %333 = vmatpush.msra.mxu0 %v310
    %334 = vmatpush.msra.mxu0 %v309
    %335 = vmatpush.msra.mxu0 %v308
    %336 = vmatpush.msra.mxu0 %v307
    %337 = vmatpush.msra.mxu0 %v306
    %338 = vmatmul.f32.gmra.mxu0 %v302
    %v339 = vpop.f32.mrf.mxu0
    %v340 = vadd.f32 0.0, %v339
    %341 = vdwg.mxu0
    %v342 = vadd.f32 %v305, %v340
    %v343 = vtanh.pop %v342
    %344 = vst [vmem:[%s304] sm:$0xff] %v343
    %s345 = scalar_lea.vmem %s5, 40
    %v346 = vld [vmem:[%s345] sm:$0xff]
    %v347 = vld [vmem:[#allocation5] sm:$0xff]
    %v348 = vld [vmem:[#allocation5 + $0x8] sm:$0xff]
    %v349 = vld [vmem:[#allocation5 + $0x10] sm:$0xff]
    %v350 = vld [vmem:[#allocation5 + $0x18] sm:$0xff]
    %v351 = vld [vmem:[#allocation5 + $0x20] sm:$0xff]
    %v352 = vld [vmem:[#allocation5 + $0x28] sm:$0xff]
    %v353 = vld [vmem:[#allocation5 + $0x30] sm:$0xff]
    %v354 = vld [vmem:[#allocation5 + $0x38] sm:$0xff]
    %v355 = vld [vmem:[#allocation5 + $0x40] sm:$0xff]
    %v356 = vld [vmem:[#allocation5 + $0x48] sm:$0xff]
    %v357 = vld [vmem:[#allocation5 + $0x50] sm:$0xff]
    %v358 = vld [vmem:[#allocation5 + $0x58] sm:$0xff]
    %v359 = vld [vmem:[#allocation5 + $0x60] sm:$0xff]
    %v360 = vld [vmem:[#allocation5 + $0x68] sm:$0xff]
    %v361 = vld [vmem:[#allocation5 + $0x70] sm:$0xff]
    %v362 = vld [vmem:[#allocation5 + $0x78] sm:$0xff]
    %363 = vmatpush.msra.mxu0 %v362
    %364 = vmatpush.msra.mxu0 %v361
    %365 = vmatpush.msra.mxu0 %v360
    %366 = vmatpush.msra.mxu0 %v359
    %367 = vmatpush.msra.mxu0 %v358
    %368 = vmatpush.msra.mxu0 %v357
    %369 = vmatpush.msra.mxu0 %v356
    %370 = vmatpush.msra.mxu0 %v355
    %371 = vmatpush.msra.mxu0 %v354
    %372 = vmatpush.msra.mxu0 %v353
    %373 = vmatpush.msra.mxu0 %v352
    %374 = vmatpush.msra.mxu0 %v351
    %375 = vmatpush.msra.mxu0 %v350
    %376 = vmatpush.msra.mxu0 %v349
    %377 = vmatpush.msra.mxu0 %v348
    %378 = vmatpush.msra.mxu0 %v347
    %379 = vmatmul.f32.gmra.mxu0 %v343
    %v380 = vpop.f32.mrf.mxu0
    %v381 = vadd.f32 0.0, %v380
    %382 = vdwg.mxu0
    %v383 = vadd.f32 %v346, %v381
    %v384 = vtanh.pop %v383
    %385 = vst [vmem:[%s345] sm:$0xff] %v384
    %s386 = scalar_lea.vmem %s5, 48
    %v387 = vld [vmem:[%s386] sm:$0xff]
    %v388 = vld [vmem:[#allocation5] sm:$0xff]
    %v389 = vld [vmem:[#allocation5 + $0x8] sm:$0xff]
    %v390 = vld [vmem:[#allocation5 + $0x10] sm:$0xff]
    %v391 = vld [vmem:[#allocation5 + $0x18] sm:$0xff]
    %v392 = vld [vmem:[#allocation5 + $0x20] sm:$0xff]
    %v393 = vld [vmem:[#allocation5 + $0x28] sm:$0xff]
    %v394 = vld [vmem:[#allocation5 + $0x30] sm:$0xff]
    %v395 = vld [vmem:[#allocation5 + $0x38] sm:$0xff]
    %v396 = vld [vmem:[#allocation5 + $0x40] sm:$0xff]
    %v397 = vld [vmem:[#allocation5 + $0x48] sm:$0xff]
    %v398 = vld [vmem:[#allocation5 + $0x50] sm:$0xff]
    %v399 = vld [vmem:[#allocation5 + $0x58] sm:$0xff]
    %v400 = vld [vmem:[#allocation5 + $0x60] sm:$0xff]
    %v401 = vld [vmem:[#allocation5 + $0x68] sm:$0xff]
    %v402 = vld [vmem:[#allocation5 + $0x70] sm:$0xff]
    %v403 = vld [vmem:[#allocation5 + $0x78] sm:$0xff]
    %404 = vmatpush.msra.mxu0 %v403
    %405 = vmatpush.msra.mxu0 %v402
    %406 = vmatpush.msra.mxu0 %v401
    %407 = vmatpush.msra.mxu0 %v400
    %408 = vmatpush.msra.mxu0 %v399
    %409 = vmatpush.msra.mxu0 %v398
    %410 = vmatpush.msra.mxu0 %v397
    %411 = vmatpush.msra.mxu0 %v396
    %412 = vmatpush.msra.mxu0 %v395
    %413 = vmatpush.msra.mxu0 %v394
    %414 = vmatpush.msra.mxu0 %v393
    %415 = vmatpush.msra.mxu0 %v392
    %416 = vmatpush.msra.mxu0 %v391
    %417 = vmatpush.msra.mxu0 %v390
    %418 = vmatpush.msra.mxu0 %v389
    %419 = vmatpush.msra.mxu0 %v388
    %420 = vmatmul.f32.gmra.mxu0 %v384
    %v421 = vpop.f32.mrf.mxu0
    %v422 = vadd.f32 0.0, %v421
    %423 = vdwg.mxu0
    %v424 = vadd.f32 %v387, %v422
    %v425 = vtanh.pop %v424
    %426 = vst [vmem:[%s386] sm:$0xff] %v425
    %s427 = scalar_lea.vmem %s5, 56
    %v428 = vld [vmem:[%s427] sm:$0xff]
    %v429 = vld [vmem:[#allocation5] sm:$0xff]
    %v430 = vld [vmem:[#allocation5 + $0x8] sm:$0xff]
    %v431 = vld [vmem:[#allocation5 + $0x10] sm:$0xff]
    %v432 = vld [vmem:[#allocation5 + $0x18] sm:$0xff]
    %v433 = vld [vmem:[#allocation5 + $0x20] sm:$0xff]
    %v434 = vld [vmem:[#allocation5 + $0x28] sm:$0xff]
    %v435 = vld [vmem:[#allocation5 + $0x30] sm:$0xff]
    %v436 = vld [vmem:[#allocation5 + $0x38] sm:$0xff]
    %v437 = vld [vmem:[#allocation5 + $0x40] sm:$0xff]
    %v438 = vld [vmem:[#allocation5 + $0x48] sm:$0xff]
    %v439 = vld [vmem:[#allocation5 + $0x50] sm:$0xff]
    %v440 = vld [vmem:[#allocation5 + $0x58] sm:$0xff]
    %v441 = vld [vmem:[#allocation5 + $0x60] sm:$0xff]
    %v442 = vld [vmem:[#allocation5 + $0x68] sm:$0xff]
    %v443 = vld [vmem:[#allocation5 + $0x70] sm:$0xff]
    %v444 = vld [vmem:[#allocation5 + $0x78] sm:$0xff]
    %445 = vmatpush.msra.mxu0 %v444
    %446 = vmatpush.msra.mxu0 %v443
    %447 = vmatpush.msra.mxu0 %v442
    %448 = vmatpush.msra.mxu0 %v441
    %449 = vmatpush.msra.mxu0 %v440
    %450 = vmatpush.msra.mxu0 %v439
    %451 = vmatpush.msra.mxu0 %v438
    %452 = vmatpush.msra.mxu0 %v437
    %453 = vmatpush.msra.mxu0 %v436
    %454 = vmatpush.msra.mxu0 %v435
    %455 = vmatpush.msra.mxu0 %v434
    %456 = vmatpush.msra.mxu0 %v433
    %457 = vmatpush.msra.mxu0 %v432
    %458 = vmatpush.msra.mxu0 %v431
    %459 = vmatpush.msra.mxu0 %v430
    %460 = vmatpush.msra.mxu0 %v429
    %461 = vmatmul.f32.gmra.mxu0 %v425
    %v462 = vpop.f32.mrf.mxu0
    %v463 = vadd.f32 0.0, %v462
    %464 = vdwg.mxu0
    %v465 = vadd.f32 %v428, %v463
    %v466 = vtanh.pop %v465
    %467 = vst [vmem:[%s427] sm:$0xff] %v466
    %468 = vst [vmem:[#allocation2] sm:$0xff] %v466
    // Predicated region
    $region34: #{run.1} parent=1 // pred_check
      _
    $region35: #{run.1} parent=1 // pred_check_branch
      %470 = sbr.rel (0) target = $region37
    $region36: #{run.1} parent=1 // pred_region
      _
    $region37: #{run.1} parent=1 // pred_fallthru
      _
    // Predicated region
    $region38: #{run.1} parent=1 // pred_check
      _
    $region39: #{run.1} parent=1 // pred_check_branch
      %472 = sbr.rel (0) target = $region41
    $region40: #{run.1} parent=1 // pred_region
      _
    $region41: #{run.1} parent=1 // pred_fallthru
      _
    %473 = vsyncpa [#allocation4], 1
    %474 = vsyncpa [#allocation6], 1

</llo_original>
